<compile_context>
chip_gen: v7x
topology: tpu7x:2x2x1
jax: 0.10.0
libtpu: 0.0.40
codegen_flags: <defaults>
</compile_context>

<pallas_src>
import functools

import jax
import jax.numpy as jnp
from jax.experimental import pallas as pl
from jax.experimental.pallas import tpu as pltpu


def _round_up(x, m):
    return ((x + m - 1) // m) * m


def _vmem_capacity_bytes():
    """Physical VMEM capacity (bytes), with a conservative v7x fallback."""
    try:
        info_fn = getattr(pltpu, "get_tpu_info", None)
        if info_fn is not None:
            info = info_fn()
            for attr in ("vmem_capacity_bytes", "vmem_bytes", "vmem_size_bytes"):
                v = getattr(info, attr, None)
                if isinstance(v, int) and v > 0:
                    return v
    except Exception:
        pass
    return 64 * 1024 * 1024  # conservative: v7x per-TensorCore VMEM


def _ffn_kernel(x_ref, w13_ref, w2t_ref, o_ref, acc_ref):
    # x_ref:   (tm, Dp)      -- same tile for every hidden step j
    # w13_ref: (Dp, 2*th)    -- hidden tile j of [w1.T | w3.T] (fused)
    # w2t_ref: (th, Dp)      -- hidden tile j of w2.T
    # o_ref:   (tm, Dp)      -- resident across j (written at last j)
    # acc_ref: (tm, Dp) f32  -- VMEM accumulator
    j = pl.program_id(1)

    @pl.when(j == 0)
    def _():
        acc_ref[...] = jnp.zeros_like(acc_ref)

    th = w13_ref.shape[1] // 2
    x = x_ref[...]
    # Single fused up-projection; slice is lane-aligned (th % 128 == 0).
    h = jnp.dot(x, w13_ref[...], preferred_element_type=jnp.float32)
    h1 = h[:, :th]
    h3 = h[:, th:]
    # SiLU gate in f32 (EUP sigmoid + VPU mul).
    gated = (h1 * jax.nn.sigmoid(h1)) * h3
    # Cast only the activation to the weight dtype for the down-projection
    # (f32 weights => no-op; bf16 weights => bf16 MXU, f32 accumulation).
    acc_ref[...] += jnp.dot(gated.astype(w2t_ref.dtype), w2t_ref[...],
                            preferred_element_type=jnp.float32)

    @pl.when(j == pl.num_programs(1) - 1)
    def _():
        o_ref[...] = acc_ref[...].astype(o_ref.dtype)


def prepare_ffn_weights(w1, w2, w3, *, th=512, dtype=jnp.bfloat16):
    """One-time weight preparation (call at model init, NOT per forward).

    w1, w3: (hidden, dim)  -- nn.Linear(dim, hidden).weight
    w2:     (dim, hidden)  -- nn.Linear(hidden, dim).weight

    Returns (w13, w2t, th_eff):
      w13: (Dp, Hp*2) -- per hidden tile j, columns [j*2*th:(j+1)*2*th] are
           [w1.T tile j | w3.T tile j] (fused up-projection weight).
      w2t: (Hp, Dp)   -- w2.T, zero padded.
    Zero padding is exact (padded hidden columns contribute silu(0)*0 through
    zero w2 rows; padded feature columns are sliced off).

    dtype=jnp.bfloat16 is the recommended production setting on every TPU
    generation (halves weight HBM traffic; MXU is natively bf16); pass
    dtype=None to keep the original precision.
    """
    H, D = w1.shape
    if dtype is not None:
        w1, w2, w3 = (w.astype(dtype) for w in (w1, w2, w3))
    Dp = _round_up(D, 128)
    th_eff = min(_round_up(th, 128), _round_up(H, 128))
    Hp = _round_up(H, th_eff)
    nj = Hp // th_eff

    w1t = jnp.zeros((Dp, Hp), w1.dtype).at[:D, :H].set(w1.T)
    w3t = jnp.zeros((Dp, Hp), w3.dtype).at[:D, :H].set(w3.T)
    w2t = jnp.zeros((Hp, Dp), w2.dtype).at[:H, :D].set(w2.T)
    # Interleave per hidden tile: tile j = [w1t tile j | w3t tile j].
    w13 = jnp.concatenate(
        [w1t.reshape(Dp, nj, th_eff), w3t.reshape(Dp, nj, th_eff)], axis=2
    ).reshape(Dp, nj * 2 * th_eff)
    return w13, w2t, th_eff


def _pick_tm(M, Dp, th, tm_req, x_bytes, w_bytes, vmem_limit):
    """Largest row tile <= tm_req whose double-buffered working set fits."""
    budget = int(vmem_limit * 0.9)
    # Double-buffered weights: w13 (Dp, 2*th) + w2t (th, Dp).
    w_buf = 2 * (3 * th * Dp) * w_bytes
    # Per output row: x + out double-buffered (same dtype) + f32 accumulator.
    per_row = Dp * (4 * x_bytes + 4)
    avail = max(budget - w_buf, 0)
    tm_cap = (avail // per_row) // 8 * 8
    tm = min(tm_req, max(tm_cap, 8), _round_up(M, 8))
    return max(8, int(tm))


@functools.partial(jax.jit, static_argnames=("th", "tm", "vmem_limit"))
def _feed_forward_impl(x, w13, w2t, *, th, tm, vmem_limit):
    B, S, D = x.shape
    M = B * S
    Dp = w13.shape[0]
    Hp = w2t.shape[0]

    Mp = _round_up(M, tm)
    x2 = x.reshape(M, D)
    needs_pad = (Mp != M) or (Dp != D)
    if needs_pad:
        # Pad only when required (rows and/or feature dim); zeros are exact.
        x2 = jnp.pad(x2, ((0, Mp - M), (0, Dp - D)))

    grid = (Mp // tm, Hp // th)

    out = pl.pallas_call(
        _ffn_kernel,
        out_shape=jax.ShapeDtypeStruct((Mp, Dp), x.dtype),
        grid_spec=pltpu.PrefetchScalarGridSpec(
            num_scalar_prefetch=0,
            grid=grid,
            in_specs=[
                # x tile depends only on i -> fetched once per M-tile.
                pl.BlockSpec((tm, Dp), lambda i, j: (i, 0)),
                pl.BlockSpec((Dp, 2 * th), lambda i, j: (0, j)),
                pl.BlockSpec((th, Dp), lambda i, j: (j, 0)),
            ],
            out_specs=pl.BlockSpec((tm, Dp), lambda i, j: (i, 0)),
            scratch_shapes=[pltpu.VMEM((tm, Dp), jnp.float32)],
        ),
        compiler_params=pltpu.CompilerParams(
            dimension_semantics=("parallel", "arbitrary"),
            vmem_limit_bytes=vmem_limit,
        ),
    )(x2, w13, w2t)

    if needs_pad:
        out = out[:M, :D]
    return out.reshape(B, S, D)


def feed_forward(x, w13, w2t, th, *, tm=None):
    """x: (batch, seq, dim); w13/w2t/th from prepare_ffn_weights.

    tm=None picks a per-generation default (1024 on 128 MiB-VMEM chips like
    v5e/v6e, 512 on 64 MiB-VMEM v7x) and auto-shrinks it so the working set
    fits the scoped VMEM budget for the actual dtypes in use.
    """
    B, S, D = x.shape
    M = B * S
    Dp = w13.shape[0]

    x_bytes = jnp.dtype(x.dtype).itemsize
    w_bytes = jnp.dtype(w13.dtype).itemsize

    vmem_cap = _vmem_capacity_bytes()
    # ~100 MiB on 128 MiB chips, ~51 MiB on 64 MiB v7x, capped at 112 MiB.
    vmem_limit = min(int(vmem_cap * 0.8), 112 * 1024 * 1024)
    if tm is None:
        tm = 1024 if vmem_cap >= 96 * 1024 * 1024 else 512
    tm_eff = _pick_tm(M, Dp, th, tm, x_bytes, w_bytes, vmem_limit)

    return _feed_forward_impl(x, w13, w2t, th=th, tm=tm_eff,
                              vmem_limit=vmem_limit)


def _reference(x, w1, w2, w3):
    hp = jax.lax.Precision.HIGHEST
    h1 = jnp.dot(x, w1.T, precision=hp)
    h3 = jnp.dot(x, w3.T, precision=hp)
    gated = (h1 * jax.nn.sigmoid(h1)) * h3
    return jnp.dot(gated, w2.T, precision=hp)


if __name__ == "__main__":
    key = jax.random.PRNGKey(0)

    # ---- Test 1: small TransformerModelArgs-consistent shapes (1x1 grid). ----
    B, S, D, H = 2, 8, 32, 64
    kx, k1, k2, k3 = jax.random.split(key, 4)
    x = jax.random.normal(kx, (B, S, D), dtype=jnp.float32)
    w1 = jax.random.normal(k1, (H, D), dtype=jnp.float32) * 0.05
    w2 = jax.random.normal(k2, (D, H), dtype=jnp.float32) * 0.05
    w3 = jax.random.normal(k3, (H, D), dtype=jnp.float32) * 0.05

    w13, w2t, th = prepare_ffn_weights(w1, w2, w3, dtype=None)  # f32, tight check
    out = feed_forward(x, w13, w2t, th)
    jax.block_until_ready(out)
    ref = _reference(x, w1, w2, w3)
    assert out.shape == (B, S, D)
    assert jnp.allclose(out, ref, atol=1e-4, rtol=1e-4), "f32 small-shape mismatch"

    # ---- Test 2: multi-tile grid (exercises j==0/j==last accumulation and ----
    # ---- multi-i output residency), f32 weights.                          ----
    B2, S2, D2, H2 = 2, 272, 256, 512   # M = 544
    kx2, k12, k22, k32 = jax.random.split(jax.random.PRNGKey(1), 4)
    x2 = jax.random.normal(kx2, (B2, S2, D2), dtype=jnp.float32)
    w1b = jax.random.normal(k12, (H2, D2), dtype=jnp.float32) * 0.05
    w2b = jax.random.normal(k22, (D2, H2), dtype=jnp.float32) * 0.05
    w3b = jax.random.normal(k32, (H2, D2), dtype=jnp.float32) * 0.05

    w13b, w2tb, thb = prepare_ffn_weights(w1b, w2b, w3b, th=256, dtype=None)
    out2 = feed_forward(x2, w13b, w2tb, thb, tm=128)   # grid = (5, 2)
    jax.block_until_ready(out2)
    ref2 = _reference(x2, w1b, w2b, w3b)
    assert out2.shape == (B2, S2, D2)
    assert jnp.allclose(out2, ref2, atol=2e-3, rtol=2e-3), "f32 multi-tile mismatch"

    # ---- Test 3: bf16 production path (bf16 weights + bf16 activations). ----
    w13c, w2tc, thc = prepare_ffn_weights(w1b, w2b, w3b, th=256, dtype=jnp.bfloat16)
    x2_bf = x2.astype(jnp.bfloat16)
    out3 = feed_forward(x2_bf, w13c, w2tc, thc)
    jax.block_until_ready(out3)
    ref3 = _reference(x2_bf.astype(jnp.float32),
                      w1b.astype(jnp.bfloat16).astype(jnp.float32),
                      w2b.astype(jnp.bfloat16).astype(jnp.float32),
                      w3b.astype(jnp.bfloat16).astype(jnp.float32))
    assert out3.dtype == jnp.bfloat16
    assert jnp.allclose(out3.astype(jnp.float32), ref3, atol=2e-2, rtol=2e-2), \
        "bf16 path mismatch"

    print("KERNEL_OK")
</pallas_src>

<mosaic_0001>
module attributes {stable_mosaic.version = 11 : i64} {
  func.func @_ffn_kernel(%arg0: i32, %arg1: i32, %arg2: memref<16x128xf32, #tpu.memory_space<vmem>>, %arg3: memref<128x256xf32, #tpu.memory_space<vmem>>, %arg4: memref<128x128xf32, #tpu.memory_space<vmem>>, %arg5: memref<16x128xf32, #tpu.memory_space<vmem>>, %arg6: memref<16x128xf32, #tpu.memory_space<vmem>>) attributes {dimension_semantics = [#tpu.dimension_semantics<parallel>, #tpu.dimension_semantics<arbitrary>], iteration_bounds = array<i64: 1, 1>, scalar_prefetch = 0 : i64, scratch_operands = 1 : i64, tpu.core_type = #tpu.core_type<tc>, window_params = [{transform_indices = @transform_0, window_bounds = array<i64: 16, 128>}, {transform_indices = @transform_1, window_bounds = array<i64: 128, 256>}, {transform_indices = @transform_2, window_bounds = array<i64: 128, 128>}, {transform_indices = @transform_3, window_bounds = array<i64: 16, 128>}]} {
    %c0_i32 = arith.constant 0 : i32
    %0 = arith.cmpi eq, %arg1, %c0_i32 : i32
    %1 = arith.extui %0 : i1 to i32
    %c0_i32_0 = arith.constant 0 : i32
    %2 = arith.cmpi ne, %1, %c0_i32_0 : i32
    scf.if %2 {
      %cst_14 = arith.constant 0.000000e+00 : f32
      %23 = vector.broadcast %cst_14 : f32 to vector<16x128xf32>
      %c0_15 = arith.constant 0 : index
      %c0_16 = arith.constant 0 : index
      %24 = vector.load %arg6[%c0_15, %c0_16] : memref<16x128xf32, #tpu.memory_space<vmem>>, vector<16x128xf32>
      tpu.vector_store %arg6[%c0_15, %c0_16], %23 {strides = array<i32>} : memref<16x128xf32, #tpu.memory_space<vmem>>, vector<16x128xf32>,
    } else {
    }
    %c0 = arith.constant 0 : index
    %c0_1 = arith.constant 0 : index
    %3 = vector.load %arg2[%c0, %c0_1] : memref<16x128xf32, #tpu.memory_space<vmem>>, vector<16x128xf32>
    %c0_2 = arith.constant 0 : index
    %c0_3 = arith.constant 0 : index
    %4 = vector.load %arg3[%c0_2, %c0_3] : memref<128x256xf32, #tpu.memory_space<vmem>>, vector<128x256xf32>
    %cst = arith.constant dense<0.000000e+00> : vector<16x256xf32>
    %5 = tpu.matmul %3, %4, %cst {dimension_numbers = #tpu.dot_dimension_numbers<[1], [0], [0], [1], [0, 0, 1, 1], [], []>} : vector<16x128xf32>, vector<128x256xf32>, vector<16x256xf32> -> vector<16x256xf32>
    %6 = vector.extract_strided_slice %5 {offsets = [0, 0], sizes = [16, 128], strides = [1, 1]} : vector<16x256xf32> to vector<16x128xf32>
    %7 = vector.extract_strided_slice %5 {offsets = [0, 128], sizes = [16, 128], strides = [1, 1]} : vector<16x256xf32> to vector<16x128xf32>
    %8 = arith.negf %6 : vector<16x128xf32>
    %9 = math.exp %8 : vector<16x128xf32>
    %cst_4 = arith.constant 1.000000e+00 : f32
    %10 = vector.broadcast %cst_4 : f32 to vector<16x128xf32>
    %11 = arith.addf %10, %9 : vector<16x128xf32>
    %12 = arith.divf %10, %11 : vector<16x128xf32>
    %13 = arith.mulf %6, %12 : vector<16x128xf32>
    %14 = arith.mulf %13, %7 : vector<16x128xf32>
    %c0_5 = arith.constant 0 : index
    %c0_6 = arith.constant 0 : index
    %15 = vector.load %arg6[%c0_5, %c0_6] : memref<16x128xf32, #tpu.memory_space<vmem>>, vector<16x128xf32>
    %c0_7 = arith.constant 0 : index
    %c0_8 = arith.constant 0 : index
    %16 = vector.load %arg4[%c0_7, %c0_8] : memref<128x128xf32, #tpu.memory_space<vmem>>, vector<128x128xf32>
    %cst_9 = arith.constant dense<0.000000e+00> : vector<16x128xf32>
    %17 = tpu.matmul %14, %16, %cst_9 {dimension_numbers = #tpu.dot_dimension_numbers<[1], [0], [0], [1], [0, 0, 1, 1], [], []>} : vector<16x128xf32>, vector<128x128xf32>, vector<16x128xf32> -> vector<16x128xf32>
    %18 = arith.addf %15, %17 : vector<16x128xf32>
    %c0_10 = arith.constant 0 : index
    %c0_11 = arith.constant 0 : index
    %19 = vector.load %arg6[%c0_10, %c0_11] : memref<16x128xf32, #tpu.memory_space<vmem>>, vector<16x128xf32>
    tpu.vector_store %arg6[%c0_10, %c0_11], %18 {strides = array<i32>} : memref<16x128xf32, #tpu.memory_space<vmem>>, vector<16x128xf32>,
    %c0_i32_12 = arith.constant 0 : i32
    %20 = arith.cmpi eq, %arg1, %c0_i32_12 : i32
    %21 = arith.extui %20 : i1 to i32
    %c0_i32_13 = arith.constant 0 : i32
    %22 = arith.cmpi ne, %21, %c0_i32_13 : i32
    scf.if %22 {
      %c0_14 = arith.constant 0 : index
      %c0_15 = arith.constant 0 : index
      %23 = vector.load %arg6[%c0_14, %c0_15] : memref<16x128xf32, #tpu.memory_space<vmem>>, vector<16x128xf32>
      %c0_16 = arith.constant 0 : index
      %c0_17 = arith.constant 0 : index
      %24 = vector.load %arg5[%c0_16, %c0_17] : memref<16x128xf32, #tpu.memory_space<vmem>>, vector<16x128xf32>
      tpu.vector_store %arg5[%c0_16, %c0_17], %23 {strides = array<i32>} : memref<16x128xf32, #tpu.memory_space<vmem>>, vector<16x128xf32>,
    } else {
    }
    return
  }
  func.func @transform_0(%arg0: i32, %arg1: i32) -> (i32, i32) {
    %c0_i32 = arith.constant 0 : i32
    %c0_i32_0 = arith.constant 0 : i32
    return %arg0, %c0_i32 : i32, i32
  }
  func.func @transform_1(%arg0: i32, %arg1: i32) -> (i32, i32) {
    %c0_i32 = arith.constant 0 : i32
    %c0_i32_0 = arith.constant 0 : i32
    return %c0_i32, %arg1 : i32, i32
  }
  func.func @transform_2(%arg0: i32, %arg1: i32) -> (i32, i32) {
    %c0_i32 = arith.constant 0 : i32
    %c0_i32_0 = arith.constant 0 : i32
    return %arg1, %c0_i32 : i32, i32
  }
  func.func @transform_3(%arg0: i32, %arg1: i32) -> (i32, i32) {
    %c0_i32 = arith.constant 0 : i32
    %c0_i32_0 = arith.constant 0 : i32
    return %arg0, %c0_i32 : i32, i32
  }
}

</mosaic_0001>

<llo_original>
// kernel: _feed_forward_impl.1
$region0: #{_feed_forward_impl.1}
  #allocation0 [shape = 'u32[]', space=smem, size = 0x4, offset = 0x4, fixed_abs, tag = 'smem constant byte address 0x4 - core index']
  #allocation1 [shape = 'u32[144,128]{1,0:T(1,128)}', space=vmem, size = 0x12000, scoped, tag = 'internal scratch']
  #allocation2 [shape = 'f32[16,128]{1,0:T(8,128)}', space=vmem, size = 0x2000, scoped, tag = 'scratch operand']
  %s0 = inlined_call_operand.vmem [shape: f32[16,128], index: 0, kind: input, shape index: {}]
  %s1 = inlined_call_operand.hbm [shape: f32[128,256], index: 1, kind: input, shape index: {}]
  %s2 = inlined_call_operand.hbm [shape: f32[128,128], index: 2, kind: input, shape index: {}]
  %s3 = inlined_call_operand.vmem [shape: f32[16,128], index: 3, kind: output, shape index: {}]
  %s4 = sld [smem:[#allocation0]]
  $region38: #{_feed_forward_impl.1} parent=0
    _
  %s6 = ssub.s32 1, %s4
  %s7 = scalar_select 0, %s6, %s4
  $region1: #{_feed_forward_impl.1} parent=0
    #allocation3 [shape = 'u8[131072]{0}', space=vmem, size = 0x20000, scoped, tag = 'input window, operand 1, single buffered']
    #allocation4 [shape = 's32[1]{0}', space=sflag, size = 0x4, scoped, tag = 'scoped memory for _feed_forward_impl.1']
    #allocation5 [shape = 'u8[65536]{0}', space=vmem, size = 0x10000, scoped, tag = 'input window, operand 2, single buffered']
    #allocation6 [shape = 's32[1]{0}', space=sflag, size = 0x4, scoped, tag = 'scoped memory for _feed_forward_impl.1']
    %8 = vsyncpa [#allocation4], 0
    %9 = vsyncpa [#allocation6], 0
    // Predicated region
    $region2: #{_feed_forward_impl.1} parent=1 // pred_check
      _
    $region3: #{_feed_forward_impl.1} parent=1 // pred_check_branch
      %11 = sbr.rel (0) target = $region5
    $region4: #{_feed_forward_impl.1} parent=1 // pred_region
      _
    $region5: #{_feed_forward_impl.1} parent=1 // pred_fallthru
      _
    // Predicated region
    $region6: #{_feed_forward_impl.1} parent=1 // pred_check
      _
    $region7: #{_feed_forward_impl.1} parent=1 // pred_check_branch
      %13 = sbr.rel (0) target = $region9
    $region8: #{_feed_forward_impl.1} parent=1 // pred_region
      %s15 = ssub.s32 4096, 4096
      %16 = vsyncadd [#allocation4], %s15
      %s17 = sshll.u32 [#allocation3], 4
      %s18 = int_to_ptr.vmem [resolvable:$true] %s17
      %23 = dma.hbm_to_vmem [thread:$0]  %s1, 4096, %s18, [#allocation4], 256, 256, 16
    $region9: #{_feed_forward_impl.1} parent=1 // pred_fallthru
      _
    // Predicated region
    $region10: #{_feed_forward_impl.1} parent=1 // pred_check
      _
    $region11: #{_feed_forward_impl.1} parent=1 // pred_check_branch
      %25 = sbr.rel (0) target = $region13
    $region12: #{_feed_forward_impl.1} parent=1 // pred_region
      %s27 = ssub.s32 2048, 2048
      %28 = vsyncadd [#allocation6], %s27
      %s29 = sshll.u32 [#allocation5], 4
      %s30 = int_to_ptr.vmem [resolvable:$true] %s29
      %35 = dma.hbm_to_vmem [thread:$0]  %s2, 2048, %s30, [#allocation6], 128, 128, 8
    $region13: #{_feed_forward_impl.1} parent=1 // pred_fallthru
      _
    // Predicated region
    $region14: #{_feed_forward_impl.1} parent=1 // pred_check
      _
    $region15: #{_feed_forward_impl.1} parent=1 // pred_check_branch
      %37 = sbr.rel (0) target = $region17
    $region16: #{_feed_forward_impl.1} parent=1 // pred_region
      %38 = dma.done [#allocation4], 4096
    $region17: #{_feed_forward_impl.1} parent=1 // pred_fallthru
      _
    // Predicated region
    $region18: #{_feed_forward_impl.1} parent=1 // pred_check
      _
    $region19: #{_feed_forward_impl.1} parent=1 // pred_check_branch
      %40 = sbr.rel (0) target = $region21
    $region20: #{_feed_forward_impl.1} parent=1 // pred_region
      %41 = dma.done [#allocation6], 2048
    $region21: #{_feed_forward_impl.1} parent=1 // pred_fallthru
      _
    %p42 = scmp.eq.s32.totalorder 0, 0
    // Predicated region
    $region22: #{_feed_forward_impl.1} parent=1 // pred_check
      %p43 = pneg %p42
    $region23: #{_feed_forward_impl.1} parent=1 // pred_check_branch
      %45 = sbr.rel (%p43) target = $region25
    $region24: #{_feed_forward_impl.1} parent=1 // pred_region
      %46 = vst [vmem:[#allocation2] sm:$0xff] 0.0
      %47 = vst [vmem:[#allocation2 + $0x8] sm:$0xff] 0.0
    $region25: #{_feed_forward_impl.1} parent=1 // pred_fallthru
      _
    %v48 = vld [vmem:[%s0] sm:$0xff]
    %v49 = vld [vmem:[%s0 + $0x8] sm:$0xff]
    %v50 = vld [vmem:[#allocation3] sm:$0xff]
    %v51 = vld [vmem:[#allocation3 + $0x8] sm:$0xff]
    %v52 = vld [vmem:[#allocation3 + $0x10] sm:$0xff]
    %v53 = vld [vmem:[#allocation3 + $0x18] sm:$0xff]
    %v54 = vld [vmem:[#allocation3 + $0x20] sm:$0xff]
    %v55 = vld [vmem:[#allocation3 + $0x28] sm:$0xff]
    %v56 = vld [vmem:[#allocation3 + $0x30] sm:$0xff]
    %v57 = vld [vmem:[#allocation3 + $0x38] sm:$0xff]
    %v58 = vld [vmem:[#allocation3 + $0x40] sm:$0xff]
    %v59 = vld [vmem:[#allocation3 + $0x48] sm:$0xff]
    %v60 = vld [vmem:[#allocation3 + $0x50] sm:$0xff]
    %v61 = vld [vmem:[#allocation3 + $0x58] sm:$0xff]
    %v62 = vld [vmem:[#allocation3 + $0x60] sm:$0xff]
    %v63 = vld [vmem:[#allocation3 + $0x68] sm:$0xff]
    %v64 = vld [vmem:[#allocation3 + $0x70] sm:$0xff]
    %v65 = vld [vmem:[#allocation3 + $0x78] sm:$0xff]
    %v66 = vld [vmem:[#allocation3 + $0x80] sm:$0xff]
    %v67 = vld [vmem:[#allocation3 + $0x88] sm:$0xff]
    %v68 = vld [vmem:[#allocation3 + $0x90] sm:$0xff]
    %v69 = vld [vmem:[#allocation3 + $0x98] sm:$0xff]
    %v70 = vld [vmem:[#allocation3 + $0xa0] sm:$0xff]
    %v71 = vld [vmem:[#allocation3 + $0xa8] sm:$0xff]
    %v72 = vld [vmem:[#allocation3 + $0xb0] sm:$0xff]
    %v73 = vld [vmem:[#allocation3 + $0xb8] sm:$0xff]
    %v74 = vld [vmem:[#allocation3 + $0xc0] sm:$0xff]
    %v75 = vld [vmem:[#allocation3 + $0xc8] sm:$0xff]
    %v76 = vld [vmem:[#allocation3 + $0xd0] sm:$0xff]
    %v77 = vld [vmem:[#allocation3 + $0xd8] sm:$0xff]
    %v78 = vld [vmem:[#allocation3 + $0xe0] sm:$0xff]
    %v79 = vld [vmem:[#allocation3 + $0xe8] sm:$0xff]
    %v80 = vld [vmem:[#allocation3 + $0xf0] sm:$0xff]
    %v81 = vld [vmem:[#allocation3 + $0xf8] sm:$0xff]
    %82 = vmatprep.subr.mxu0 %v51
    %83 = vmatpush1.msra.mxu0 %v50
    %84 = vmatprep.subr.mxu0 %v53
    %85 = vmatpush1.msra.mxu0 %v52
    %86 = vmatprep.subr.mxu0 %v55
    %87 = vmatpush1.msra.mxu0 %v54
    %88 = vmatprep.subr.mxu0 %v57
    %89 = vmatpush1.msra.mxu0 %v56
    %90 = vmatprep.subr.mxu0 %v59
    %91 = vmatpush1.msra.mxu0 %v58
    %92 = vmatprep.subr.mxu0 %v61
    %93 = vmatpush1.msra.mxu0 %v60
    %94 = vmatprep.subr.mxu0 %v63
    %95 = vmatpush1.msra.mxu0 %v62
    %96 = vmatprep.subr.mxu0 %v65
    %97 = vmatpush1.msra.mxu0 %v64
    %98 = vmatprep.subr.mxu0 %v67
    %99 = vmatpush1.msra.mxu0 %v66
    %100 = vmatprep.subr.mxu0 %v69
    %101 = vmatpush1.msra.mxu0 %v68
    %102 = vmatprep.subr.mxu0 %v71
    %103 = vmatpush1.msra.mxu0 %v70
    %104 = vmatprep.subr.mxu0 %v73
    %105 = vmatpush1.msra.mxu0 %v72
    %106 = vmatprep.subr.mxu0 %v75
    %107 = vmatpush1.msra.mxu0 %v74
    %108 = vmatprep.subr.mxu0 %v77
    %109 = vmatpush1.msra.mxu0 %v76
    %110 = vmatprep.subr.mxu0 %v79
    %111 = vmatpush1.msra.mxu0 %v78
    %112 = vmatprep.subr.mxu0 %v81
    %113 = vmatpush1.msra.mxu0 %v80
    %114 = vmatprep.subr.mxu0 0.0
    %115 = vmatpush1.msra.mxu0 0.0
    %116 = vmatprep.subr.mxu0 0.0
    %117 = vmatpush1.msra.mxu0 0.0
    %118 = vmatprep.subr.mxu0 0.0
    %119 = vmatpush1.msra.mxu0 0.0
    %120 = vmatprep.subr.mxu0 0.0
    %121 = vmatpush1.msra.mxu0 0.0
    %122 = vmatprep.subr.mxu0 0.0
    %123 = vmatpush1.msra.mxu0 0.0
    %124 = vmatprep.subr.mxu0 0.0
    %125 = vmatpush1.msra.mxu0 0.0
    %126 = vmatprep.subr.mxu0 0.0
    %127 = vmatpush1.msra.mxu0 0.0
    %128 = vmatprep.subr.mxu0 0.0
    %129 = vmatpush1.msra.mxu0 0.0
    %130 = vmatprep.subr.mxu0 0.0
    %131 = vmatpush1.msra.mxu0 0.0
    %132 = vmatprep.subr.mxu0 0.0
    %133 = vmatpush1.msra.mxu0 0.0
    %134 = vmatprep.subr.mxu0 0.0
    %135 = vmatpush1.msra.mxu0 0.0
    %136 = vmatprep.subr.mxu0 0.0
    %137 = vmatpush1.msra.mxu0 0.0
    %138 = vmatprep.subr.mxu0 0.0
    %139 = vmatpush1.msra.mxu0 0.0
    %140 = vmatprep.subr.mxu0 0.0
    %141 = vmatpush1.msra.mxu0 0.0
    %142 = vmatprep.subr.mxu0 0.0
    %143 = vmatpush1.msra.mxu0 0.0
    %144 = vmatprep.subr.mxu0 0.0
    %145 = vmatpush1.msra.mxu0 0.0
    %146 = vmatprep.mubr.f32.mxu0 0.0
    %147 = vmatmul.mubr.f32.gmra.mrb[0].mxu0 %v48
    %v148 = vpop.f32.mrb[0].mxu0
    %v149 = vadd.f32 0.0, %v148
    %v150 = vpop.f32.mrb[0].mxu0
    %v151 = vadd.f32 0.0, %v150
    %152 = vmatprep.mubr.f32.mxu0 0.0
    %153 = vmatmul.mubr.f32.gmra.mrb[0].mxu0 %v49
    %v154 = vpop.f32.mrb[0].mxu0
    %v155 = vadd.f32 0.0, %v154
    %v156 = vpop.f32.mrb[0].mxu0
    %v157 = vadd.f32 0.0, %v156
    %158 = vdwg.mxu0
    %v159 = vxor.u32 %v149, 2147483648
    %v160 = vxor.u32 %v155, 2147483648
    %v161 = vmul.f32 %v159, 1.442695
    %v162 = vpow.pop %v161
    %v163 = vmul.f32 %v160, 1.442695
    %v164 = vpow.pop %v163
    %v165 = vadd.f32 %v162, 1.0
    %v166 = vadd.f32 %v164, 1.0
    %v167 = vrcp.pop %v165
    %v168 = vmul.f32 1.0, %v167
    %v169 = vrcp.pop %v166
    %v170 = vmul.f32 1.0, %v169
    %v171 = vmul.f32 %v149, %v168
    %v172 = vmul.f32 %v155, %v170
    %v173 = vmul.f32 %v171, %v151
    %v174 = vmul.f32 %v172, %v157
    %v175 = vld [vmem:[#allocation2] sm:$0xff]
    %v176 = vld [vmem:[#allocation2 + $0x8] sm:$0xff]
    %v177 = vld [vmem:[#allocation5] sm:$0xff]
    %v178 = vld [vmem:[#allocation5 + $0x8] sm:$0xff]
    %v179 = vld [vmem:[#allocation5 + $0x10] sm:$0xff]
    %v180 = vld [vmem:[#allocation5 + $0x18] sm:$0xff]
    %v181 = vld [vmem:[#allocation5 + $0x20] sm:$0xff]
    %v182 = vld [vmem:[#allocation5 + $0x28] sm:$0xff]
    %v183 = vld [vmem:[#allocation5 + $0x30] sm:$0xff]
    %v184 = vld [vmem:[#allocation5 + $0x38] sm:$0xff]
    %v185 = vld [vmem:[#allocation5 + $0x40] sm:$0xff]
    %v186 = vld [vmem:[#allocation5 + $0x48] sm:$0xff]
    %v187 = vld [vmem:[#allocation5 + $0x50] sm:$0xff]
    %v188 = vld [vmem:[#allocation5 + $0x58] sm:$0xff]
    %v189 = vld [vmem:[#allocation5 + $0x60] sm:$0xff]
    %v190 = vld [vmem:[#allocation5 + $0x68] sm:$0xff]
    %v191 = vld [vmem:[#allocation5 + $0x70] sm:$0xff]
    %v192 = vld [vmem:[#allocation5 + $0x78] sm:$0xff]
    %193 = vmatprep.subr.mxu0 0.0
    %194 = vmatpush1.msra.mxu0 %v177
    %195 = vmatprep.subr.mxu0 0.0
    %196 = vmatpush1.msra.mxu0 %v178
    %197 = vmatprep.subr.mxu0 0.0
    %198 = vmatpush1.msra.mxu0 %v179
    %199 = vmatprep.subr.mxu0 0.0
    %200 = vmatpush1.msra.mxu0 %v180
    %201 = vmatprep.subr.mxu0 0.0
    %202 = vmatpush1.msra.mxu0 %v181
    %203 = vmatprep.subr.mxu0 0.0
    %204 = vmatpush1.msra.mxu0 %v182
    %205 = vmatprep.subr.mxu0 0.0
    %206 = vmatpush1.msra.mxu0 %v183
    %207 = vmatprep.subr.mxu0 0.0
    %208 = vmatpush1.msra.mxu0 %v184
    %209 = vmatprep.subr.mxu0 0.0
    %210 = vmatpush1.msra.mxu0 %v185
    %211 = vmatprep.subr.mxu0 0.0
    %212 = vmatpush1.msra.mxu0 %v186
    %213 = vmatprep.subr.mxu0 0.0
    %214 = vmatpush1.msra.mxu0 %v187
    %215 = vmatprep.subr.mxu0 0.0
    %216 = vmatpush1.msra.mxu0 %v188
    %217 = vmatprep.subr.mxu0 0.0
    %218 = vmatpush1.msra.mxu0 %v189
    %219 = vmatprep.subr.mxu0 0.0
    %220 = vmatpush1.msra.mxu0 %v190
    %221 = vmatprep.subr.mxu0 0.0
    %222 = vmatpush1.msra.mxu0 %v191
    %223 = vmatprep.subr.mxu0 0.0
    %224 = vmatpush1.msra.mxu0 %v192
    %225 = vmatprep.subr.mxu0 0.0
    %226 = vmatpush1.msra.mxu0 0.0
    %227 = vmatprep.subr.mxu0 0.0
    %228 = vmatpush1.msra.mxu0 0.0
    %229 = vmatprep.subr.mxu0 0.0
    %230 = vmatpush1.msra.mxu0 0.0
    %231 = vmatprep.subr.mxu0 0.0
    %232 = vmatpush1.msra.mxu0 0.0
    %233 = vmatprep.subr.mxu0 0.0
    %234 = vmatpush1.msra.mxu0 0.0
    %235 = vmatprep.subr.mxu0 0.0
    %236 = vmatpush1.msra.mxu0 0.0
    %237 = vmatprep.subr.mxu0 0.0
    %238 = vmatpush1.msra.mxu0 0.0
    %239 = vmatprep.subr.mxu0 0.0
    %240 = vmatpush1.msra.mxu0 0.0
    %241 = vmatprep.subr.mxu0 0.0
    %242 = vmatpush1.msra.mxu0 0.0
    %243 = vmatprep.subr.mxu0 0.0
    %244 = vmatpush1.msra.mxu0 0.0
    %245 = vmatprep.subr.mxu0 0.0
    %246 = vmatpush1.msra.mxu0 0.0
    %247 = vmatprep.subr.mxu0 0.0
    %248 = vmatpush1.msra.mxu0 0.0
    %249 = vmatprep.subr.mxu0 0.0
    %250 = vmatpush1.msra.mxu0 0.0
    %251 = vmatprep.subr.mxu0 0.0
    %252 = vmatpush1.msra.mxu0 0.0
    %253 = vmatprep.subr.mxu0 0.0
    %254 = vmatpush1.msra.mxu0 0.0
    %255 = vmatprep.subr.mxu0 0.0
    %256 = vmatpush1.msra.mxu0 0.0
    %257 = vmatprep.mubr.f32.mxu0 0.0
    %258 = vmatmul.mubr.f32.gmra.mrb[0].mxu0 %v173
    %v259 = vpop.f32.mrb[0].mxu0
    %v260 = vadd.f32 0.0, %v259
    %v261 = vpop.f32.mrb[0].mxu0
    %262 = vmatprep.mubr.f32.mxu0 0.0
    %263 = vmatmul.mubr.f32.gmra.mrb[0].mxu0 %v174
    %v264 = vpop.f32.mrb[0].mxu0
    %v265 = vadd.f32 0.0, %v264
    %v266 = vpop.f32.mrb[0].mxu0
    %267 = vdwg.mxu0
    %v268 = vadd.f32 %v175, %v260
    %v269 = vadd.f32 %v176, %v265
    %270 = vst [vmem:[#allocation2] sm:$0xff] %v268
    %271 = vst [vmem:[#allocation2 + $0x8] sm:$0xff] %v269
    // Predicated region
    $region26: #{_feed_forward_impl.1} parent=1 // pred_check
      %p272 = pneg %p42
    $region27: #{_feed_forward_impl.1} parent=1 // pred_check_branch
      %274 = sbr.rel (%p272) target = $region29
    $region28: #{_feed_forward_impl.1} parent=1 // pred_region
      %v275 = vld [vmem:[#allocation2] sm:$0xff]
      %v276 = vld [vmem:[#allocation2 + $0x8] sm:$0xff]
      %277 = vst [vmem:[%s3] sm:$0xff] %v275
      %278 = vst [vmem:[%s3 + $0x8] sm:$0xff] %v276
    $region29: #{_feed_forward_impl.1} parent=1 // pred_fallthru
      _
    // Predicated region
    $region30: #{_feed_forward_impl.1} parent=1 // pred_check
      _
    $region31: #{_feed_forward_impl.1} parent=1 // pred_check_branch
      %280 = sbr.rel (0) target = $region33
    $region32: #{_feed_forward_impl.1} parent=1 // pred_region
      _
    $region33: #{_feed_forward_impl.1} parent=1 // pred_fallthru
      _
    // Predicated region
    $region34: #{_feed_forward_impl.1} parent=1 // pred_check
      _
    $region35: #{_feed_forward_impl.1} parent=1 // pred_check_branch
      %282 = sbr.rel (0) target = $region37
    $region36: #{_feed_forward_impl.1} parent=1 // pred_region
      _
    $region37: #{_feed_forward_impl.1} parent=1 // pred_fallthru
      _
    %283 = vsyncpa [#allocation4], 1
    %284 = vsyncpa [#allocation6], 1

</llo_original>
